<compile_context>
chip_gen: v5e
topology: v5e:2x2
jax: 0.10.0
libtpu: 0.0.40
codegen_flags: <defaults>
</compile_context>

<pallas_src>
import functools

import jax
import jax.numpy as jnp
from jax import lax
from jax.experimental import pallas as pl
from jax.experimental.pallas import tpu as pltpu


def _round_up(x: int, m: int) -> int:
    return (x + m - 1) // m * m


def _vmem_capacity_bytes() -> int:
    try:
        return int(pltpu.get_tpu_info().vmem_capacity_bytes)
    except Exception:
        return 64 * 1024 * 1024   # conservative default (v7x per-TensorCore)


# ---------------------------------------------------------------------------
# Path A (default): VMEM-resident tables, gather via one-hot MXU matmuls.
# ---------------------------------------------------------------------------
def _mf_onehot_kernel(uidx_ref, bidx_ref, tag_ref, utbl_ref, btbl_ref,
                      w_ref, b_ref, out_ref, *, block_b: int):
    nu = utbl_ref.shape[0]
    nb = btbl_ref.shape[0]

    uidx = uidx_ref[...]                      # (TB, 1) int32
    bidx = bidx_ref[...]                      # (TB, 1) int32

    # Exact row selection: one-hot rows contain a single 1.0, so the MXU
    # matmul reproduces the embedding lookup bit-exactly in f32.
    u_oh = (lax.broadcasted_iota(jnp.int32, (block_b, nu), 1) == uidx
            ).astype(jnp.float32)
    b_oh = (lax.broadcasted_iota(jnp.int32, (block_b, nb), 1) == bidx
            ).astype(jnp.float32)
    user_emb = jnp.dot(u_oh, utbl_ref[...], preferred_element_type=jnp.float32)
    book_emb = jnp.dot(b_oh, btbl_ref[...], preferred_element_type=jnp.float32)

    # Linear(hidden_state, E): (TB, H) @ (H, E) + (1, E) bias.
    tag_proj = (jnp.dot(tag_ref[...], w_ref[...],
                        preferred_element_type=jnp.float32) + b_ref[...])

    prod = user_emb * (book_emb + tag_proj)   # (TB, E)
    # Lane-dense store; the (TB,)->(1,TB) relayout is an accepted minor cost.
    out_ref[...] = jnp.sum(prod, axis=1).reshape(1, block_b)


# ---------------------------------------------------------------------------
# Path B (fallback, tables too large for VMEM): fused HBM row gather.
#   - aggregate wait: one descriptor per semaphore sized to the whole buffer
#   - unrolled DMA-issue loop
# ---------------------------------------------------------------------------
def _mf_dma_gather_kernel(
    # scalar-prefetch refs (SMEM)
    user_idx_ref, book_idx_ref,
    # inputs
    user_tbl_hbm, book_tbl_hbm,      # (num_users, E) / (num_books, E), HBM
    tag_ref,                         # (TB, H) VMEM tile
    w_ref,                           # (H, E)  VMEM, resident
    b_ref,                           # (1, E)  VMEM, resident
    # output
    out_ref,                         # (1, TB) VMEM, lane-dense
    # scratch
    ubuf, bbuf,                      # (TB, E) VMEM gather buffers
    sem,                             # DMA semaphores, shape (2,)
    *, block_b: int,
):
    base = pl.multiple_of(pl.program_id(0) * block_b, block_b)

    # 1) Issue per-row embedding gathers (HBM -> VMEM).  Unrolled so the SMEM
    #    index loads / address math co-issue with the DMA starts.
    #    TODO(synk): with a persistent E-padded-to-128 table layout each row
    #    copy would be >=512 B; also cross-grid-step double buffering of
    #    ubuf/bbuf ((2, TB, E) + sem (2, 2)) would hide the gather latency.
    def _issue(r, carry):
        u = user_idx_ref[base + r]
        bk = book_idx_ref[base + r]
        pltpu.make_async_copy(user_tbl_hbm.at[u], ubuf.at[r], sem.at[0]).start()
        pltpu.make_async_copy(book_tbl_hbm.at[bk], bbuf.at[r], sem.at[1]).start()
        return carry

    lax.fori_loop(0, block_b, _issue, 0, unroll=8)

    # 2) MXU projection overlaps with the in-flight gather DMAs.
    tag_proj = (jnp.dot(tag_ref[...], w_ref[...],
                        preferred_element_type=jnp.float32) + b_ref[...])

    # 3) One aggregate wait per semaphore: DMA semaphores count bytes, so a
    #    descriptor covering the full (TB, E) buffer (== TB row copies worth
    #    of bytes started on that semaphore) completes the whole gather in a
    #    single wait instead of 2*TB serialized row-sized waits.
    pltpu.make_async_copy(ubuf, ubuf, sem.at[0]).wait()
    pltpu.make_async_copy(bbuf, bbuf, sem.at[1]).wait()

    # 4) Fused elementwise + row reduction; lane-dense store.
    prod = ubuf[...] * (bbuf[...] + tag_proj)
    out_ref[...] = jnp.sum(prod, axis=1).reshape(1, block_b)


def matrix_factorization_forward(user, book, tag_embedding, params, *,
                                 block_b=None, force_hbm_gather=False):
    """user, book: int (B,) index vectors; tag_embedding: (B, H) float32."""
    user_table = params["user_embeddings"]   # (num_users, E)
    book_table = params["book_embeddings"]   # (num_books, E)
    w_t = params["linear_w_t"]               # (H, E)  transposed Linear weight
    bias = params["linear_b"]                # (1, E)

    B = int(user.shape[0])
    H = int(tag_embedding.shape[1])
    E = int(user_table.shape[1])
    nu = int(user_table.shape[0])
    nb = int(book_table.shape[0])

    vmem_cap = _vmem_capacity_bytes()
    if block_b is None:
        # 128 MiB VMEM parts (v5e/v6e): bigger tiles amortize per-step cost.
        # 64 MiB-per-TC parts (v7x): stay at 512 rows.
        block_b = 1024 if vmem_cap >= 100 * (1 << 20) else 512

    if B > block_b:
        tb = _round_up(block_b, 128)
        num_tiles = -(-B // tb)
    else:
        tb = _round_up(max(B, 1), 8)
        num_tiles = 1
    b_pad = num_tiles * tb

    user = user.astype(jnp.int32)
    book = book.astype(jnp.int32)
    tag = tag_embedding.astype(jnp.float32)
    pad = b_pad - B
    if pad:
        user = jnp.pad(user, (0, pad))               # index 0 is always valid
        book = jnp.pad(book, (0, pad))
        tag = jnp.pad(tag, ((0, pad), (0, 0)))

    e_pad = _round_up(E, 128)
    h_pad = _round_up(H, 128)
    tb_lanes = _round_up(tb, 128)

    # VMEM footprint of both tables after (8, 128) layout padding.
    tbl_bytes = 4 * (_round_up(nu, 8) + _round_up(nb, 8)) * e_pad
    use_onehot = (not force_hbm_gather
                  and max(nu, nb) <= 2048
                  and tbl_bytes <= 16 * (1 << 20))

    # TODO(synk): bf16 tables/tag would halve HBM traffic (esp. v5e); kept f32
    # to match the PyTorch reference numerics exactly.

    if use_onehot:
        # -------- Path A: no manual DMAs at all --------
        est = (
            2 * 4 * tb * h_pad                       # tag tile, double-buffered
            + 2 * 2 * 4 * tb * 128                   # index column tiles
            + 2 * 4 * 8 * tb_lanes                   # out tile
            + 2 * tbl_bytes                          # resident tables (cons. x2)
            + 2 * 4 * _round_up(H, 8) * e_pad        # resident weight
            + 2 * 4 * 8 * e_pad                      # resident bias
            + 2 * 4 * tb * (_round_up(nu, 128) + _round_up(nb, 128))  # one-hots
            + 4 * 4 * tb * e_pad                     # emb/prod temporaries
        )
        vmem_limit = int(min(max(2 * est, 32 << 20), (vmem_cap * 3) // 4))

        grid_spec = pltpu.PrefetchScalarGridSpec(
            num_scalar_prefetch=0,
            grid=(num_tiles,),
            in_specs=[
                pl.BlockSpec((tb, 1), lambda i: (i, 0)),     # user idx column
                pl.BlockSpec((tb, 1), lambda i: (i, 0)),     # book idx column
                pl.BlockSpec((tb, H), lambda i: (i, 0)),     # tag tile
                pl.BlockSpec((nu, E), lambda i: (0, 0)),     # user table, resident
                pl.BlockSpec((nb, E), lambda i: (0, 0)),     # book table, resident
                pl.BlockSpec((H, E), lambda i: (0, 0)),      # weight, resident
                pl.BlockSpec((1, E), lambda i: (0, 0)),      # bias, resident
            ],
            out_specs=pl.BlockSpec((1, tb), lambda i: (0, i)),
        )
        flops = 2 * b_pad * (H + nu + nb) * E + 3 * b_pad * E
        bytes_accessed = 4 * (b_pad * (H + 2) + (nu + nb + H + 1) * E + b_pad)

        out = pl.pallas_call(
            functools.partial(_mf_onehot_kernel, block_b=tb),
            out_shape=jax.ShapeDtypeStruct((1, b_pad), jnp.float32),
            grid_spec=grid_spec,
            compiler_params=pltpu.CompilerParams(
                dimension_semantics=("parallel",),
                vmem_limit_bytes=vmem_limit,
            ),
            cost_estimate=pl.CostEstimate(
                flops=int(flops), transcendentals=0,
                bytes_accessed=int(bytes_accessed)),
        )(user.reshape(b_pad, 1), book.reshape(b_pad, 1), tag,
          user_table, book_table, w_t, bias)

    else:
        # -------- Path B: fused HBM row gather (large tables) --------
        # TODO(synk): for batches beyond ~100K rows switch the scalar-prefetched
        # index vectors to per-tile SMEM blocks to bound SMEM usage.
        est = (
            2 * 4 * tb * h_pad                       # tag tile, double-buffered
            + 2 * 4 * 8 * tb_lanes                   # out tile
            + 2 * 4 * _round_up(H, 8) * e_pad        # resident weight
            + 2 * 4 * 8 * e_pad                      # resident bias
            + 2 * 4 * tb * e_pad                     # ubuf + bbuf gather scratch
            + 2 * 4 * tb * e_pad                     # elementwise temporaries
        )
        vmem_limit = int(min(max(2 * est, 32 << 20), (vmem_cap * 3) // 4))

        grid_spec = pltpu.PrefetchScalarGridSpec(
            num_scalar_prefetch=2,                   # user/book indices -> SMEM
            grid=(num_tiles,),
            in_specs=[
                pl.BlockSpec(memory_space=pl.ANY),   # user table stays in HBM
                pl.BlockSpec(memory_space=pl.ANY),   # book table stays in HBM
                pl.BlockSpec((tb, H), lambda i, u, b: (i, 0)),   # tag tile
                pl.BlockSpec((H, E), lambda i, u, b: (0, 0)),    # weight, resident
                pl.BlockSpec((1, E), lambda i, u, b: (0, 0)),    # bias, resident
            ],
            out_specs=pl.BlockSpec((1, tb), lambda i, u, b: (0, i)),
            scratch_shapes=[
                pltpu.VMEM((tb, E), jnp.float32),    # gathered user rows
                pltpu.VMEM((tb, E), jnp.float32),    # gathered book rows
                pltpu.SemaphoreType.DMA((2,)),
            ],
        )
        flops = 2 * b_pad * H * E + 3 * b_pad * E
        bytes_accessed = 4 * (b_pad * (H + 2 * E + 2) + (H + 1) * E)

        out = pl.pallas_call(
            functools.partial(_mf_dma_gather_kernel, block_b=tb),
            out_shape=jax.ShapeDtypeStruct((1, b_pad), jnp.float32),
            grid_spec=grid_spec,
            compiler_params=pltpu.CompilerParams(
                dimension_semantics=("parallel",),
                vmem_limit_bytes=vmem_limit,
            ),
            cost_estimate=pl.CostEstimate(
                flops=int(flops), transcendentals=0,
                bytes_accessed=int(bytes_accessed)),
        )(user, book, user_table, book_table, tag, w_t, bias)

    return out[0, :B]            # (B,)


def init_params(key, num_users, num_books, embedding_dim, hidden_state):
    k1, k2, k3, k4 = jax.random.split(key, 4)
    user_embeddings = jax.random.normal(k1, (num_users, embedding_dim), jnp.float32)
    book_embeddings = jax.random.normal(k2, (num_books, embedding_dim), jnp.float32)
    # torch Linear(hidden_state, embedding_dim): weight (E, H), bias (E,);
    # store the transposed weight (H, E) for the kernel.
    bound = 1.0 / jnp.sqrt(hidden_state)
    linear_w_t = jax.random.uniform(
        k3, (hidden_state, embedding_dim), jnp.float32, -bound, bound)
    linear_b = jax.random.uniform(
        k4, (1, embedding_dim), jnp.float32, -bound, bound)
    # NOTE: self.output = nn.Linear(embedding_dim, 6) exists in __init__ but is
    # not used in forward(), so it is intentionally not instantiated here.
    return {
        "user_embeddings": user_embeddings,
        "book_embeddings": book_embeddings,
        "linear_w_t": linear_w_t,
        "linear_b": linear_b,
    }


if __name__ == "__main__":
    num_users, num_books = 10, 12
    embedding_dim, hidden_state = 16, 32

    key = jax.random.PRNGKey(0)
    kp, ku, kb, kt, ku2, kb2, kt2, ku3, kb3, kt3 = jax.random.split(key, 10)
    params = init_params(kp, num_users, num_books, embedding_dim, hidden_state)

    def reference(user, book, tag):
        ue = params["user_embeddings"][user]
        be = params["book_embeddings"][book]
        tp = tag @ params["linear_w_t"] + params["linear_b"]
        return jnp.sum(ue * (be + tp), axis=1)

    # Case 1: small batch, single tile, VMEM-resident one-hot gather path.
    B = 8
    user = jax.random.randint(ku, (B,), 0, num_users, dtype=jnp.int32)
    book = jax.random.randint(kb, (B,), 0, num_books, dtype=jnp.int32)
    tag = jax.random.normal(kt, (B, hidden_state), jnp.float32)
    out = jax.block_until_ready(matrix_factorization_forward(user, book, tag, params))
    assert out.shape == (B,)
    assert jnp.allclose(out, reference(user, book, tag), atol=1e-5, rtol=1e-5)

    # Case 2: multi-tile grid + batch padding, still the one-hot path.
    B2 = 300
    user2 = jax.random.randint(ku2, (B2,), 0, num_users, dtype=jnp.int32)
    book2 = jax.random.randint(kb2, (B2,), 0, num_books, dtype=jnp.int32)
    tag2 = jax.random.normal(kt2, (B2, hidden_state), jnp.float32)
    out2 = jax.block_until_ready(
        matrix_factorization_forward(user2, book2, tag2, params, block_b=128))
    assert out2.shape == (B2,)
    assert jnp.allclose(out2, reference(user2, book2, tag2), atol=1e-5, rtol=1e-5)

    # Case 3: force the large-table fallback (HBM-resident tables, fused DMA
    # gather with aggregate waits + unrolled issue loop) so it stays exercised.
    B3 = 200
    user3 = jax.random.randint(ku3, (B3,), 0, num_users, dtype=jnp.int32)
    book3 = jax.random.randint(kb3, (B3,), 0, num_books, dtype=jnp.int32)
    tag3 = jax.random.normal(kt3, (B3, hidden_state), jnp.float32)
    out3 = jax.block_until_ready(
        matrix_factorization_forward(user3, book3, tag3, params,
                                     block_b=128, force_hbm_gather=True))
    assert out3.shape == (B3,)
    assert jnp.allclose(out3, reference(user3, book3, tag3), atol=1e-5, rtol=1e-5)

    print("KERNEL_OK")
</pallas_src>

<mosaic_0001>
module attributes {stable_mosaic.version = 11 : i64} {
  func.func @_mf_onehot_kernel(%arg0: i32, %arg1: memref<8x1xi32, #tpu.memory_space<vmem>>, %arg2: memref<8x1xi32, #tpu.memory_space<vmem>>, %arg3: memref<8x32xf32, #tpu.memory_space<vmem>>, %arg4: memref<10x16xf32, #tpu.memory_space<vmem>>, %arg5: memref<12x16xf32, #tpu.memory_space<vmem>>, %arg6: memref<32x16xf32, #tpu.memory_space<vmem>>, %arg7: memref<1x16xf32, #tpu.memory_space<vmem>>, %arg8: memref<1x8xf32, #tpu.memory_space<vmem>>) attributes {dimension_semantics = [#tpu.dimension_semantics<parallel>], iteration_bounds = array<i64: 1>, scalar_prefetch = 0 : i64, scratch_operands = 0 : i64, tpu.core_type = #tpu.core_type<tc>, window_params = [{transform_indices = @transform_0, window_bounds = array<i64: 8, 1>}, {transform_indices = @transform_1, window_bounds = array<i64: 8, 1>}, {transform_indices = @transform_2, window_bounds = array<i64: 8, 32>}, {pipeline_mode = #tpu.pipeline_mode<synchronous>, transform_indices = @transform_3, window_bounds = array<i64: 10, 16>}, {pipeline_mode = #tpu.pipeline_mode<synchronous>, transform_indices = @transform_4, window_bounds = array<i64: 12, 16>}, {pipeline_mode = #tpu.pipeline_mode<synchronous>, transform_indices = @transform_5, window_bounds = array<i64: 32, 16>}, {pipeline_mode = #tpu.pipeline_mode<synchronous>, transform_indices = @transform_6, window_bounds = array<i64: 1, 16>}, {transform_indices = @transform_7, window_bounds = array<i64: 1, 8>}]} {
    %c0 = arith.constant 0 : index
    %c0_0 = arith.constant 0 : index
    %0 = vector.load %arg1[%c0, %c0_0] : memref<8x1xi32, #tpu.memory_space<vmem>>, vector<8x1xi32>
    %c0_1 = arith.constant 0 : index
    %c0_2 = arith.constant 0 : index
    %1 = vector.load %arg2[%c0_1, %c0_2] : memref<8x1xi32, #tpu.memory_space<vmem>>, vector<8x1xi32>
    %2 = tpu.iota {dimensions = array<i32: 1>} : vector<8x10xi32>
    %3 = vector.broadcast %0 : vector<8x1xi32> to vector<8x10xi32>
    %4 = arith.cmpi eq, %2, %3 : vector<8x10xi32>
    %5 = arith.extui %4 : vector<8x10xi1> to vector<8x10xi32>
    %6 = arith.sitofp %5 : vector<8x10xi32> to vector<8x10xf32>
    %7 = tpu.iota {dimensions = array<i32: 1>} : vector<8x12xi32>
    %8 = vector.broadcast %1 : vector<8x1xi32> to vector<8x12xi32>
    %9 = arith.cmpi eq, %7, %8 : vector<8x12xi32>
    %10 = arith.extui %9 : vector<8x12xi1> to vector<8x12xi32>
    %11 = arith.sitofp %10 : vector<8x12xi32> to vector<8x12xf32>
    %c0_3 = arith.constant 0 : index
    %c0_4 = arith.constant 0 : index
    %12 = vector.load %arg4[%c0_3, %c0_4] : memref<10x16xf32, #tpu.memory_space<vmem>>, vector<10x16xf32>
    %cst = arith.constant dense<0.000000e+00> : vector<8x16xf32>
    %13 = tpu.matmul %6, %12, %cst {dimension_numbers = #tpu.dot_dimension_numbers<[1], [0], [0], [1], [0, 0, 1, 1], [], []>} : vector<8x10xf32>, vector<10x16xf32>, vector<8x16xf32> -> vector<8x16xf32>
    %c0_5 = arith.constant 0 : index
    %c0_6 = arith.constant 0 : index
    %14 = vector.load %arg5[%c0_5, %c0_6] : memref<12x16xf32, #tpu.memory_space<vmem>>, vector<12x16xf32>
    %cst_7 = arith.constant dense<0.000000e+00> : vector<8x16xf32>
    %15 = tpu.matmul %11, %14, %cst_7 {dimension_numbers = #tpu.dot_dimension_numbers<[1], [0], [0], [1], [0, 0, 1, 1], [], []>} : vector<8x12xf32>, vector<12x16xf32>, vector<8x16xf32> -> vector<8x16xf32>
    %c0_8 = arith.constant 0 : index
    %c0_9 = arith.constant 0 : index
    %16 = vector.load %arg3[%c0_8, %c0_9] : memref<8x32xf32, #tpu.memory_space<vmem>>, vector<8x32xf32>
    %c0_10 = arith.constant 0 : index
    %c0_11 = arith.constant 0 : index
    %17 = vector.load %arg6[%c0_10, %c0_11] : memref<32x16xf32, #tpu.memory_space<vmem>>, vector<32x16xf32>
    %cst_12 = arith.constant dense<0.000000e+00> : vector<8x16xf32>
    %18 = tpu.matmul %16, %17, %cst_12 {dimension_numbers = #tpu.dot_dimension_numbers<[1], [0], [0], [1], [0, 0, 1, 1], [], []>} : vector<8x32xf32>, vector<32x16xf32>, vector<8x16xf32> -> vector<8x16xf32>
    %c0_13 = arith.constant 0 : index
    %c0_14 = arith.constant 0 : index
    %19 = vector.load %arg7[%c0_13, %c0_14] : memref<1x16xf32, #tpu.memory_space<vmem>>, vector<1x16xf32>
    %20 = vector.broadcast %19 : vector<1x16xf32> to vector<8x16xf32>
    %21 = arith.addf %18, %20 : vector<8x16xf32>
    %22 = arith.addf %15, %21 : vector<8x16xf32>
    %23 = arith.mulf %13, %22 : vector<8x16xf32>
    %cst_15 = arith.constant dense<0.000000e+00> : vector<8xf32>
    %24 = vector.multi_reduction <add>, %23, %cst_15 [1] : vector<8x16xf32> to vector<8xf32>
    %25 = vector.shape_cast %24 : vector<8xf32> to vector<1x8xf32>
    %c0_16 = arith.constant 0 : index
    %c0_17 = arith.constant 0 : index
    %26 = vector.load %arg8[%c0_16, %c0_17] : memref<1x8xf32, #tpu.memory_space<vmem>>, vector<1x8xf32>
    tpu.vector_store %arg8[%c0_16, %c0_17], %25 {strides = array<i32>} : memref<1x8xf32, #tpu.memory_space<vmem>>, vector<1x8xf32>,
    return
  }
  func.func @transform_0(%arg0: i32) -> (i32, i32) {
    %c0_i32 = arith.constant 0 : i32
    %c0_i32_0 = arith.constant 0 : i32
    return %arg0, %c0_i32 : i32, i32
  }
  func.func @transform_1(%arg0: i32) -> (i32, i32) {
    %c0_i32 = arith.constant 0 : i32
    %c0_i32_0 = arith.constant 0 : i32
    return %arg0, %c0_i32 : i32, i32
  }
  func.func @transform_2(%arg0: i32) -> (i32, i32) {
    %c0_i32 = arith.constant 0 : i32
    %c0_i32_0 = arith.constant 0 : i32
    return %arg0, %c0_i32 : i32, i32
  }
  func.func @transform_3(%arg0: i32) -> (i32, i32) {
    %c0_i32 = arith.constant 0 : i32
    %c0_i32_0 = arith.constant 0 : i32
    %c0_i32_1 = arith.constant 0 : i32
    return %c0_i32, %c0_i32_0 : i32, i32
  }
  func.func @transform_4(%arg0: i32) -> (i32, i32) {
    %c0_i32 = arith.constant 0 : i32
    %c0_i32_0 = arith.constant 0 : i32
    %c0_i32_1 = arith.constant 0 : i32
    return %c0_i32, %c0_i32_0 : i32, i32
  }
  func.func @transform_5(%arg0: i32) -> (i32, i32) {
    %c0_i32 = arith.constant 0 : i32
    %c0_i32_0 = arith.constant 0 : i32
    %c0_i32_1 = arith.constant 0 : i32
    return %c0_i32, %c0_i32_0 : i32, i32
  }
  func.func @transform_6(%arg0: i32) -> (i32, i32) {
    %c0_i32 = arith.constant 0 : i32
    %c0_i32_0 = arith.constant 0 : i32
    %c0_i32_1 = arith.constant 0 : i32
    return %c0_i32, %c0_i32_0 : i32, i32
  }
  func.func @transform_7(%arg0: i32) -> (i32, i32) {
    %c0_i32 = arith.constant 0 : i32
    %c0_i32_0 = arith.constant 0 : i32
    return %c0_i32, %arg0 : i32, i32
  }
}

</mosaic_0001>

<llo_original>
// kernel: tpu_custom_call.1
$region0: #{tpu_custom_call.1}
  #allocation0 [shape = 'u32[]', space=smem, size = 0x4, offset = 0x4, fixed_abs, tag = 'smem constant byte address 0x4 - core index']
  #allocation1 [shape = 'u32[72,128]{1,0:T(1,128)}', space=vmem, size = 0x9000, scoped, tag = 'internal scratch']
  %s0 = inlined_call_operand.vmem [shape: s32[8,1], index: 0, kind: input, shape index: {}]
  %s1 = inlined_call_operand.vmem [shape: s32[8,1], index: 1, kind: input, shape index: {}]
  %s2 = inlined_call_operand.vmem [shape: f32[8,32], index: 2, kind: input, shape index: {}]
  %s3 = inlined_call_operand.vmem [shape: f32[10,16], index: 3, kind: input, shape index: {}]
  %s4 = inlined_call_operand.vmem [shape: f32[12,16], index: 4, kind: input, shape index: {}]
  %s5 = inlined_call_operand.vmem [shape: f32[32,16], index: 5, kind: input, shape index: {}]
  %s6 = inlined_call_operand.vmem [shape: f32[1,16], index: 6, kind: input, shape index: {}]
  %s7 = inlined_call_operand.hbm [shape: f32[1,8], index: 7, kind: output, shape index: {}]
  %s8 = sld [smem:[#allocation0]]
  $region38: #{tpu_custom_call.1} parent=0
    _
  %s10 = ssub.s32 1, %s8
  %s11 = scalar_select 0, %s10, %s8
  $region1: #{tpu_custom_call.1} parent=0
    #allocation2 [shape = 'u8[512]{0}', space=vmem, size = 0x400, scoped, tag = 'output window, operand 0, single buffered']
    #allocation3 [shape = 's32[1]{0}', space=sflag, size = 0x4, scoped, tag = 'scoped memory for tpu_custom_call.1']
    %12 = vsyncpa [#allocation3], 0
    // Predicated region
    $region2: #{tpu_custom_call.1} parent=1 // pred_check
      _
    $region3: #{tpu_custom_call.1} parent=1 // pred_check_branch
      %14 = sbr.rel (0) target = $region5
    $region4: #{tpu_custom_call.1} parent=1 // pred_region
      _
    $region5: #{tpu_custom_call.1} parent=1 // pred_fallthru
      _
    // Predicated region
    $region6: #{tpu_custom_call.1} parent=1 // pred_check
      _
    $region7: #{tpu_custom_call.1} parent=1 // pred_check_branch
      %16 = sbr.rel (0) target = $region9
    $region8: #{tpu_custom_call.1} parent=1 // pred_region
      _
    $region9: #{tpu_custom_call.1} parent=1 // pred_fallthru
      _
    // Predicated region
    $region10: #{tpu_custom_call.1} parent=1 // pred_check
      _
    $region11: #{tpu_custom_call.1} parent=1 // pred_check_branch
      %18 = sbr.rel (0) target = $region13
    $region12: #{tpu_custom_call.1} parent=1 // pred_region
      _
    $region13: #{tpu_custom_call.1} parent=1 // pred_fallthru
      _
    // Predicated region
    $region14: #{tpu_custom_call.1} parent=1 // pred_check
      _
    $region15: #{tpu_custom_call.1} parent=1 // pred_check_branch
      %20 = sbr.rel (0) target = $region17
    $region16: #{tpu_custom_call.1} parent=1 // pred_region
      _
    $region17: #{tpu_custom_call.1} parent=1 // pred_fallthru
      _
    // Predicated region
    $region18: #{tpu_custom_call.1} parent=1 // pred_check
      _
    $region19: #{tpu_custom_call.1} parent=1 // pred_check_branch
      %22 = sbr.rel (0) target = $region21
    $region20: #{tpu_custom_call.1} parent=1 // pred_region
      _
    $region21: #{tpu_custom_call.1} parent=1 // pred_fallthru
      _
    // Predicated region
    $region22: #{tpu_custom_call.1} parent=1 // pred_check
      _
    $region23: #{tpu_custom_call.1} parent=1 // pred_check_branch
      %24 = sbr.rel (0) target = $region25
    $region24: #{tpu_custom_call.1} parent=1 // pred_region
      _
    $region25: #{tpu_custom_call.1} parent=1 // pred_fallthru
      _
    // Predicated region
    $region26: #{tpu_custom_call.1} parent=1 // pred_check
      _
    $region27: #{tpu_custom_call.1} parent=1 // pred_check_branch
      %26 = sbr.rel (0) target = $region29
    $region28: #{tpu_custom_call.1} parent=1 // pred_region
      _
    $region29: #{tpu_custom_call.1} parent=1 // pred_fallthru
      _
    %v27 = vld [vmem:[%s0] sm:$0xff]
    %v28 = vld [vmem:[%s1] sm:$0xff]
    %v29 = vlaneseq
    %v30 = vand.u32 %v29, 127
    %31 = vset.pattern.permute.xlu0 0
    %32 = vperm.xlu0 %31, %v27
    %v33 = vpop.permute.xlu0 %32
    %vm34 = vcmp.eq.s32.totalorder %v30, %v33
    %v35 = vsel %vm34, 1, 0
    %v36 = vcvt.s32.f32 %v35
    %37 = vset.pattern.permute.xlu0 0
    %38 = vperm.xlu0 %37, %v28
    %v39 = vpop.permute.xlu0 %38
    %vm40 = vcmp.eq.s32.totalorder %v30, %v39
    %v41 = vsel %vm40, 1, 0
    %v42 = vcvt.s32.f32 %v41
    %v43 = vld [vmem:[%s3] sm:$0xff]
    %v44 = vld [vmem:[%s3 + $0x8] sm:$0x3]
    %vm45 = vcmask 80896
    %v47 = vsel %vm45, %v36, 0
    %vm49 = vcmask 1041408
    %v51 = vsel %vm49, %v44, 0
    %53 = vmatpush.msra.mxu0 0.0
    %54 = vmatpush.msra.mxu0 0.0
    %55 = vmatpush.msra.mxu0 0.0
    %56 = vmatpush.msra.mxu0 0.0
    %57 = vmatpush.msra.mxu0 0.0
    %58 = vmatpush.msra.mxu0 0.0
    %59 = vmatpush.msra.mxu0 0.0
    %60 = vmatpush.msra.mxu0 0.0
    %61 = vmatpush.msra.mxu0 0.0
    %62 = vmatpush.msra.mxu0 0.0
    %63 = vmatpush.msra.mxu0 0.0
    %64 = vmatpush.msra.mxu0 0.0
    %65 = vmatpush.msra.mxu0 0.0
    %66 = vmatpush.msra.mxu0 0.0
    %67 = vmatpush.msra.mxu0 %v51
    %68 = vmatpush.msra.mxu0 %v43
    %69 = vmatmul.f32.gmra.mxu0 %v47
    %v70 = vpop.f32.mrf.mxu0
    %v71 = vadd.f32 0.0, %v70
    %72 = vdwg.mxu0
    %v73 = vld [vmem:[%s4] sm:$0xff]
    %v74 = vld [vmem:[%s4 + $0x8] sm:$0xf]
    %v75 = vld [vmem:[%s2] sm:$0xff]
    %v76 = vld [vmem:[%s5] sm:$0xff]
    %v77 = vld [vmem:[%s5 + $0x8] sm:$0xff]
    %v78 = vld [vmem:[%s5 + $0x10] sm:$0xff]
    %v79 = vld [vmem:[%s5 + $0x18] sm:$0xff]
    %v80 = vld [vmem:[%s6] sm:$0x1]
    %v82 = vperm.slane %v80, 0
    %vm84 = vcmask 261120
    %v86 = vsel %vm84, %v75, 0
    %88 = vmatpush.msra.mxu0 0.0
    %89 = vmatpush.msra.mxu0 0.0
    %90 = vmatpush.msra.mxu0 0.0
    %91 = vmatpush.msra.mxu0 0.0
    %92 = vmatpush.msra.mxu0 0.0
    %93 = vmatpush.msra.mxu0 0.0
    %94 = vmatpush.msra.mxu0 0.0
    %95 = vmatpush.msra.mxu0 0.0
    %96 = vmatpush.msra.mxu0 0.0
    %97 = vmatpush.msra.mxu0 0.0
    %98 = vmatpush.msra.mxu0 0.0
    %99 = vmatpush.msra.mxu0 0.0
    %100 = vmatpush.msra.mxu0 %v79
    %101 = vmatpush.msra.mxu0 %v78
    %102 = vmatpush.msra.mxu0 %v77
    %103 = vmatpush.msra.mxu0 %v76
    %104 = vmatmul.f32.gmra.mxu0 %v86
    %v105 = vpop.f32.mrf.mxu0
    %v106 = vadd.f32 %v82, %v105
    %107 = vdwg.mxu0
    %vm108 = vcmask 97280
    %v110 = vsel %vm108, %v42, 0
    %vm112 = vcmask 1043456
    %v114 = vsel %vm112, %v74, 0
    %116 = vmatpush.msra.mxu0 0.0
    %117 = vmatpush.msra.mxu0 0.0
    %118 = vmatpush.msra.mxu0 0.0
    %119 = vmatpush.msra.mxu0 0.0
    %120 = vmatpush.msra.mxu0 0.0
    %121 = vmatpush.msra.mxu0 0.0
    %122 = vmatpush.msra.mxu0 0.0
    %123 = vmatpush.msra.mxu0 0.0
    %124 = vmatpush.msra.mxu0 0.0
    %125 = vmatpush.msra.mxu0 0.0
    %126 = vmatpush.msra.mxu0 0.0
    %127 = vmatpush.msra.mxu0 0.0
    %128 = vmatpush.msra.mxu0 0.0
    %129 = vmatpush.msra.mxu0 0.0
    %130 = vmatpush.msra.mxu0 %v114
    %131 = vmatpush.msra.mxu0 %v73
    %132 = vmatmul.f32.gmra.mxu0 %v110
    %v133 = vpop.f32.mrf.mxu0
    %v134 = vadd.f32 %v106, %v133
    %135 = vdwg.mxu0
    %v136 = vmul.f32 %v71, %v134
    %vm137 = vcmask 130048
    %v138 = vsel %vm137, %v136, 0.0
    %139 = vadd.xlane.f32.xlu0 %v138
    %v140 = vpop.xlane.xlu0 %139
    %v142 = vperm.slane %v140, %v30
    %vm144 = vcmask 57344
    %145 = vst.msk [vmem:[#allocation2] sm:$0x1] %vm144, %v142
    // Predicated region
    $region30: #{tpu_custom_call.1} parent=1 // pred_check
      _
    $region31: #{tpu_custom_call.1} parent=1 // pred_check_branch
      %147 = sbr.rel (0) target = $region33
    $region32: #{tpu_custom_call.1} parent=1 // pred_region
      %149 = vsyncadd [#allocation3], 0
      %s151 = sshll.u32 [#allocation2], 4
      %s152 = int_to_ptr.vmem [resolvable:$true] %s151
      %s153 = sshll.u32 %s7, 4
      %s154 = int_to_ptr.hbm [resolvable:$true] %s153
      %156 = dma.vmem_to_hbm [thread:$0]  %s152, 16, %s154, [#allocation3]
    $region33: #{tpu_custom_call.1} parent=1 // pred_fallthru
      _
    // Predicated region
    $region34: #{tpu_custom_call.1} parent=1 // pred_check
      _
    $region35: #{tpu_custom_call.1} parent=1 // pred_check_branch
      %158 = sbr.rel (0) target = $region37
    $region36: #{tpu_custom_call.1} parent=1 // pred_region
      %160 = dma.done [#allocation3], 16
    $region37: #{tpu_custom_call.1} parent=1 // pred_fallthru
      _
    %161 = vsyncpa [#allocation3], 1

</llo_original>
